<compile_context>
chip_gen: v6e
topology: v6e:2x2x1
jax: 0.10.0
libtpu: 0.0.40
codegen_flags: <defaults>
</compile_context>

<pallas_src>
import functools

import numpy as np
import jax
import jax.numpy as jnp
from jax.experimental import pallas as pl
from jax.experimental.pallas import tpu as pltpu

LANE = 128


def _dice_single_kernel(x_ref, t_ref, o_ref, *, smooth, apply_sigmoid):
    """One grid step handles `bb` whole batch rows: x_ref/t_ref are (bb, R, 128)."""
    x = x_ref[...].astype(jnp.float32)
    if apply_sigmoid:
        x = jax.nn.sigmoid(x)
    t = t_ref[...].astype(jnp.float32)

    num = jnp.sum(x * t, axis=1)                    # (bb, 128) per-lane intersection
    den = jnp.sum(x + t, axis=1)                    # (bb, 128) per-lane sum(x)+sum(t)
    num = jnp.sum(num, axis=1, keepdims=True)       # (bb, 1)
    den = jnp.sum(den, axis=1, keepdims=True)       # (bb, 1)
    dice = (2.0 * num + smooth) / (den + smooth)
    o_ref[...] = (1.0 - dice).reshape(o_ref.shape)


def _dice_multi_kernel(x_ref, t_ref, o_ref, num_acc, den_acc, *, smooth,
                       apply_sigmoid, row_tile, valid_rows_last, needs_mask):
    """Grid (b, k): accumulate Dice sums for batch b over spatial row tile k.

    x_ref/t_ref are (row_tile, 128) (batch dim squeezed).  Accumulators are full
    (8, 128) vregs; the cross-sublane/lane reduce happens only in the finalize.
    """
    k = pl.program_id(1)
    nk = pl.num_programs(1)

    @pl.when(k == 0)
    def _():
        num_acc[...] = jnp.zeros_like(num_acc)
        den_acc[...] = jnp.zeros_like(den_acc)

    x = x_ref[...].astype(jnp.float32)              # (row_tile, 128)
    if apply_sigmoid:
        x = jax.nn.sigmoid(x)
    t = t_ref[...].astype(jnp.float32)

    g = row_tile // 8

    def accumulate(xv, tv):
        xg = xv.reshape(g, 8, LANE)                 # regroup along full (8,128) vregs
        tg = tv.reshape(g, 8, LANE)
        num_acc[...] += jnp.sum(xg * tg, axis=0)    # pure VPU adds over g vregs
        den_acc[...] += jnp.sum(xg + tg, axis=0)

    if needs_mask:
        is_last = k == nk - 1

        @pl.when(jnp.logical_not(is_last))
        def _():
            accumulate(x, t)                        # hot path: mask-free

        @pl.when(is_last)
        def _():
            # Mask rows beyond the true extent; applied AFTER the sigmoid so the
            # out-of-bounds garbage contributes exactly 0 to both sums.
            rows = jax.lax.broadcasted_iota(jnp.int32, (row_tile, LANE), 0)
            m = rows < valid_rows_last
            accumulate(jnp.where(m, x, 0.0), jnp.where(m, t, 0.0))
    else:
        accumulate(x, t)

    @pl.when(k == nk - 1)
    def _():
        num = jnp.sum(num_acc[...], axis=0, keepdims=True)   # (1, 128)
        den = jnp.sum(den_acc[...], axis=0, keepdims=True)
        num = jnp.sum(num, axis=1, keepdims=True)            # (1, 1)
        den = jnp.sum(den, axis=1, keepdims=True)
        dice = (2.0 * num + smooth) / (den + smooth)
        o_ref[...] = (1.0 - dice).reshape(1, 1, 1)


def dice_loss(x, target, smooth=1.0, *, apply_sigmoid=False, reduction="none",
              max_row_tile=8192):
    """Pallas TPU implementation of DiceLoss.forward.

    x      : (B, H, W) float — probabilities, or logits if apply_sigmoid=True.
             bf16 inputs are supported end-to-end (streamed in native dtype,
             accumulated in f32) and halve the dominant HBM stream.
    target : (B, H, W) numeric mask (int8 {0,1} recommended: cuts HBM bytes).
             Like the PyTorch module, non-binary values are multiplied as-is.
    returns: (B,) float32 if reduction == 'none', else a scalar.
    """
    assert max_row_tile % 32 == 0, "row tile must stay a multiple of 32"
    B = x.shape[0]
    hw = int(np.prod(x.shape[1:]))
    xf = x.reshape(B, hw)                           # native dtype; no wrapper cast
    tf = target.reshape(B, hw)

    # Lane-dense view: (B, hw) -> (B, n_rows, 128).  Free (no copy) whenever hw is
    # a multiple of 128; otherwise pad by <=127 elems (zeros are neutral for the
    # sums; -1e4 so sigmoid(pad)==0 exactly in f32 when the sigmoid is fused).
    rem = hw % LANE
    if rem:
        pad = LANE - rem
        x_pad_val = -1e4 if apply_sigmoid else 0
        xf = jnp.pad(xf, ((0, 0), (0, pad)), constant_values=x_pad_val)
        tf = jnp.pad(tf, ((0, 0), (0, pad)), constant_values=0)
    n_rows = pl.cdiv(hw, LANE)

    x3 = xf.reshape(B, n_rows, LANE)
    t3 = tf.reshape(B, n_rows, LANE)

    if n_rows <= max_row_tile:
        # Single reduction step: batch-block so each grid step still streams up to
        # max_row_tile*128 elements.  No accumulators / masking needed.
        bb = min(B, max(1, max_row_tile // n_rows))
        kernel = functools.partial(_dice_single_kernel, smooth=float(smooth),
                                   apply_sigmoid=bool(apply_sigmoid))
        grid = (pl.cdiv(B, bb),)
        in_specs = [pl.BlockSpec((bb, n_rows, LANE), lambda i: (i, 0, 0)),
                    pl.BlockSpec((bb, n_rows, LANE), lambda i: (i, 0, 0))]
        out_specs = pl.BlockSpec((bb, 1, 1), lambda i: (i, 0, 0))
        scratch = []
        dims = ("parallel",)
        blk_rows = bb * n_rows
    else:
        # Multi-step streaming reduction over k; ragged last tile masked in-kernel.
        row_tile = max_row_tile
        n_k = pl.cdiv(n_rows, row_tile)
        valid_last = n_rows - (n_k - 1) * row_tile
        kernel = functools.partial(_dice_multi_kernel, smooth=float(smooth),
                                   apply_sigmoid=bool(apply_sigmoid),
                                   row_tile=row_tile,
                                   valid_rows_last=int(valid_last),
                                   needs_mask=(valid_last != row_tile))
        grid = (B, n_k)                                      # reduction axis last
        in_specs = [pl.BlockSpec((None, row_tile, LANE), lambda b, k: (b, k, 0)),
                    pl.BlockSpec((None, row_tile, LANE), lambda b, k: (b, k, 0))]
        out_specs = pl.BlockSpec((1, 1, 1), lambda b, k: (b, 0, 0))
        scratch = [pltpu.VMEM((8, LANE), jnp.float32),       # intersection acc
                   pltpu.VMEM((8, LANE), jnp.float32)]       # denominator acc
        dims = ("parallel", "arbitrary")
        blk_rows = row_tile

    # Explicit scoped-VMEM budget: double-buffered input blocks + upcast/temp
    # headroom, capped so the same code compiles on v5e (16 MiB default scoped)
    # through v7x (64 MiB physical per TensorCore).
    blk_bytes = blk_rows * LANE * (x3.dtype.itemsize + t3.dtype.itemsize)
    vmem_bytes = int(min(max(4 * blk_bytes + (8 << 20), 32 << 20), 48 << 20))

    out = pl.pallas_call(
        kernel,
        out_shape=jax.ShapeDtypeStruct((B, 1, 1), jnp.float32),
        grid_spec=pltpu.PrefetchScalarGridSpec(
            num_scalar_prefetch=0,
            grid=grid,
            in_specs=in_specs,
            out_specs=out_specs,
            scratch_shapes=scratch,
        ),
        compiler_params=pltpu.CompilerParams(
            dimension_semantics=dims,           # batch axis across TCs on v7x
            vmem_limit_bytes=vmem_bytes,
        ),
    )(x3, t3)

    dice = out[:, 0, 0]
    if reduction == "sum":
        return dice.sum()
    if reduction == "mean":
        return dice.mean()
    return dice                                  # reduction == 'none' (module default)


def dice_loss_on_batch(x, target, smooth=1.0, *, apply_sigmoid=False,
                       max_row_tile=8192):
    """Mirrors DiceLoss.run_on_batch: (B, N, H, W) -> per-(batch, channel) loss (B, N).

    The PyTorch source returns inside the reduction=='none' branch, so
    run_on_batch always returns the un-reduced (B, N) loss; we replicate that.
    """
    B, N = x.shape[0], x.shape[1]
    xb = x.reshape((B * N,) + x.shape[2:])
    tb = target.reshape((B * N,) + target.shape[2:])
    loss = dice_loss(xb, tb, smooth, apply_sigmoid=apply_sigmoid,
                     reduction="none", max_row_tile=max_row_tile)
    return loss.reshape(B, N)


def _reference(x, target, smooth=1.0, apply_sigmoid=False):
    """Pure-JAX reference mirroring the PyTorch math."""
    B = x.shape[0]
    xf = x.reshape(B, -1).astype(jnp.float32)
    tf = target.reshape(B, -1).astype(jnp.float32)
    if apply_sigmoid:
        xf = jax.nn.sigmoid(xf)
    inter = (xf * tf).sum(axis=1)
    dice = (2.0 * inter + smooth) / (xf.sum(axis=1) + tf.sum(axis=1) + smooth)
    return 1.0 - dice


if __name__ == "__main__":
    key = jax.random.PRNGKey(0)
    ks = jax.random.split(key, 8)

    # Case 1: module defaults (activation=None, reduction='none'), B=2, H=W=16.
    # hw=256 is a multiple of 128 -> free reshape, single-step batch-blocked path.
    B, H, W = 2, 16, 16
    x = jax.random.uniform(ks[0], (B, H, W), dtype=jnp.float32)       # probabilities
    t = jax.random.bernoulli(ks[1], 0.5, (B, H, W)).astype(jnp.int8)  # int8 mask
    out = jax.block_until_ready(dice_loss(x, t))
    ref = _reference(x, t)
    assert out.shape == (B,)
    assert np.allclose(np.asarray(out), np.asarray(ref), rtol=1e-4, atol=1e-6)

    # Case 2: sigmoid activation + 'mean' reduction, 80x80 (6400 = 50*128).
    # max_row_tile=32 forces the multi-step path with a masked ragged last tile.
    H2, W2 = 80, 80
    x2 = jax.random.normal(ks[2], (B, H2, W2), dtype=jnp.float32)     # logits
    t2 = jax.random.bernoulli(ks[3], 0.3, (B, H2, W2)).astype(jnp.int8)
    out2 = jax.block_until_ready(
        dice_loss(x2, t2, apply_sigmoid=True, reduction="mean", max_row_tile=32))
    ref2 = _reference(x2, t2, apply_sigmoid=True).mean()
    assert np.allclose(np.asarray(out2), np.asarray(ref2), rtol=1e-4, atol=1e-6)

    # Case 3: run_on_batch-style call, (B, N, H, W) -> (B, N).
    N = 3
    x3 = jax.random.uniform(ks[4], (B, N, H, W), dtype=jnp.float32)
    t3 = jax.random.bernoulli(ks[5], 0.5, (B, N, H, W)).astype(jnp.int8)
    out3 = jax.block_until_ready(dice_loss_on_batch(x3, t3))
    ref3 = _reference(x3.reshape(B * N, H, W), t3.reshape(B * N, H, W)).reshape(B, N)
    assert out3.shape == (B, N)
    assert np.allclose(np.asarray(out3), np.asarray(ref3), rtol=1e-4, atol=1e-6)

    # Case 4: H*W not a multiple of 128 (13x17=221) + sigmoid + 'sum' reduction.
    H4, W4 = 13, 17
    x4 = jax.random.normal(ks[6], (B, H4, W4), dtype=jnp.float32)
    t4 = jax.random.bernoulli(ks[7], 0.4, (B, H4, W4)).astype(jnp.int8)
    out4 = jax.block_until_ready(
        dice_loss(x4, t4, apply_sigmoid=True, reduction="sum"))
    ref4 = _reference(x4, t4, apply_sigmoid=True).sum()
    assert np.allclose(np.asarray(out4), np.asarray(ref4), rtol=1e-4, atol=1e-6)

    print("KERNEL_OK")
</pallas_src>

<mosaic_0001>
module attributes {stable_mosaic.version = 11 : i64} {
  func.func @_dice_single_kernel(%arg0: i32, %arg1: memref<2x2x128xf32, #tpu.memory_space<vmem>>, %arg2: memref<2x2x128xi8, #tpu.memory_space<vmem>>, %arg3: memref<2x1x1xf32, #tpu.memory_space<vmem>>) attributes {dimension_semantics = [#tpu.dimension_semantics<parallel>], iteration_bounds = array<i64: 1>, scalar_prefetch = 0 : i64, scratch_operands = 0 : i64, tpu.core_type = #tpu.core_type<tc>, window_params = [{transform_indices = @transform_0, window_bounds = array<i64: 2, 2, 128>}, {transform_indices = @transform_1, window_bounds = array<i64: 2, 2, 128>}, {transform_indices = @transform_2, window_bounds = array<i64: 2, 1, 1>}]} {
    %c0 = arith.constant 0 : index
    %c0_0 = arith.constant 0 : index
    %c0_1 = arith.constant 0 : index
    %0 = vector.load %arg1[%c0, %c0_0, %c0_1] : memref<2x2x128xf32, #tpu.memory_space<vmem>>, vector<2x2x128xf32>
    %c0_2 = arith.constant 0 : index
    %c0_3 = arith.constant 0 : index
    %c0_4 = arith.constant 0 : index
    %1 = vector.load %arg2[%c0_2, %c0_3, %c0_4] : memref<2x2x128xi8, #tpu.memory_space<vmem>>, vector<2x2x128xi8>
    %2 = arith.sitofp %1 : vector<2x2x128xi8> to vector<2x2x128xf32>
    %3 = arith.mulf %0, %2 : vector<2x2x128xf32>
    %cst = arith.constant dense<0.000000e+00> : vector<2x128xf32>
    %4 = vector.multi_reduction <add>, %3, %cst [1] : vector<2x2x128xf32> to vector<2x128xf32>
    %5 = arith.addf %0, %2 : vector<2x2x128xf32>
    %cst_5 = arith.constant dense<0.000000e+00> : vector<2x128xf32>
    %6 = vector.multi_reduction <add>, %5, %cst_5 [1] : vector<2x2x128xf32> to vector<2x128xf32>
    %cst_6 = arith.constant dense<0.000000e+00> : vector<2xf32>
    %7 = vector.multi_reduction <add>, %4, %cst_6 [1] : vector<2x128xf32> to vector<2xf32>
    %8 = vector.shape_cast %7 : vector<2xf32> to vector<2x1xf32>
    %cst_7 = arith.constant dense<0.000000e+00> : vector<2xf32>
    %9 = vector.multi_reduction <add>, %6, %cst_7 [1] : vector<2x128xf32> to vector<2xf32>
    %10 = vector.shape_cast %9 : vector<2xf32> to vector<2x1xf32>
    %cst_8 = arith.constant 2.000000e+00 : f32
    %11 = vector.broadcast %cst_8 : f32 to vector<2x1xf32>
    %12 = arith.mulf %11, %8 : vector<2x1xf32>
    %cst_9 = arith.constant 1.000000e+00 : f32
    %13 = vector.broadcast %cst_9 : f32 to vector<2x1xf32>
    %14 = arith.addf %12, %13 : vector<2x1xf32>
    %cst_10 = arith.constant 1.000000e+00 : f32
    %15 = vector.broadcast %cst_10 : f32 to vector<2x1xf32>
    %16 = arith.addf %10, %15 : vector<2x1xf32>
    %17 = arith.divf %14, %16 : vector<2x1xf32>
    %cst_11 = arith.constant 1.000000e+00 : f32
    %18 = vector.broadcast %cst_11 : f32 to vector<2x1xf32>
    %19 = arith.subf %18, %17 : vector<2x1xf32>
    %20 = vector.shape_cast %19 : vector<2x1xf32> to vector<2x1x1xf32>
    %c0_12 = arith.constant 0 : index
    %c0_13 = arith.constant 0 : index
    %c0_14 = arith.constant 0 : index
    %21 = vector.load %arg3[%c0_12, %c0_13, %c0_14] : memref<2x1x1xf32, #tpu.memory_space<vmem>>, vector<2x1x1xf32>
    tpu.vector_store %arg3[%c0_12, %c0_13, %c0_14], %20 {strides = array<i32>} : memref<2x1x1xf32, #tpu.memory_space<vmem>>, vector<2x1x1xf32>,
    return
  }
  func.func @transform_0(%arg0: i32) -> (i32, i32, i32) {
    %c0_i32 = arith.constant 0 : i32
    %c0_i32_0 = arith.constant 0 : i32
    %c0_i32_1 = arith.constant 0 : i32
    return %arg0, %c0_i32, %c0_i32_0 : i32, i32, i32
  }
  func.func @transform_1(%arg0: i32) -> (i32, i32, i32) {
    %c0_i32 = arith.constant 0 : i32
    %c0_i32_0 = arith.constant 0 : i32
    %c0_i32_1 = arith.constant 0 : i32
    return %arg0, %c0_i32, %c0_i32_0 : i32, i32, i32
  }
  func.func @transform_2(%arg0: i32) -> (i32, i32, i32) {
    %c0_i32 = arith.constant 0 : i32
    %c0_i32_0 = arith.constant 0 : i32
    %c0_i32_1 = arith.constant 0 : i32
    return %arg0, %c0_i32, %c0_i32_0 : i32, i32, i32
  }
}

</mosaic_0001>

<llo_original>
// kernel: tpu_custom_call.1
$region0: #{tpu_custom_call.1}
  #allocation0 [shape = 'u32[]', space=smem, size = 0x4, offset = 0x4, fixed_abs, tag = 'smem constant byte address 0x4 - core index']
  #allocation1 [shape = 'u32[144,128]{1,0:T(1,128)}', space=vmem, size = 0x12000, scoped, tag = 'internal scratch']
  %s0 = inlined_call_operand.hbm [shape: f32[2,2,128], index: 0, kind: input, shape index: {}]
  %s1 = inlined_call_operand.hbm [shape: s8[2,2,128], index: 1, kind: input, shape index: {}]
  %s2 = inlined_call_operand.vmem [shape: f32[2,1,1], index: 2, kind: output, shape index: {}]
  %s3 = sld [smem:[#allocation0]]
  $region26: #{tpu_custom_call.1} parent=0
    _
  %s5 = ssub.s32 1, %s3
  %s6 = scalar_select 0, %s5, %s3
  $region1: #{tpu_custom_call.1} parent=0
    #allocation2 [shape = 'u8[2048]{0}', space=vmem, size = 0x800, scoped, tag = 'input window, operand 0, single buffered']
    #allocation3 [shape = 's32[1]{0}', space=sflag, size = 0x4, scoped, tag = 'scoped memory for tpu_custom_call.1']
    #allocation4 [shape = 'u8[1024]{0}', space=vmem, size = 0x400, scoped, tag = 'input window, operand 1, single buffered']
    #allocation5 [shape = 's32[1]{0}', space=sflag, size = 0x4, scoped, tag = 'scoped memory for tpu_custom_call.1']
    %7 = vsyncpa [#allocation3], 0
    %8 = vsyncpa [#allocation5], 0
    // Predicated region
    $region2: #{tpu_custom_call.1} parent=1 // pred_check
      _
    $region3: #{tpu_custom_call.1} parent=1 // pred_check_branch
      %10 = sbr.rel (0) target = $region5
    $region4: #{tpu_custom_call.1} parent=1 // pred_region
      %s12 = ssub.s32 64, 64
      %13 = vsyncadd [#allocation3], %s12
      %s14 = sshll.u32 [#allocation2], 4
      %s15 = int_to_ptr.vmem [resolvable:$true] %s14
      %20 = dma.hbm_to_vmem [thread:$0]  %s0, 64, %s15, [#allocation3], 32, 32, 2
    $region5: #{tpu_custom_call.1} parent=1 // pred_fallthru
      _
    // Predicated region
    $region6: #{tpu_custom_call.1} parent=1 // pred_check
      _
    $region7: #{tpu_custom_call.1} parent=1 // pred_check_branch
      %22 = sbr.rel (0) target = $region9
    $region8: #{tpu_custom_call.1} parent=1 // pred_region
      %s24 = ssub.s32 32, 32
      %25 = vsyncadd [#allocation5], %s24
      %s26 = sshll.u32 [#allocation4], 4
      %s27 = int_to_ptr.vmem [resolvable:$true] %s26
      %32 = dma.hbm_to_vmem [thread:$0]  %s1, 32, %s27, [#allocation5], 16, 16, 1
    $region9: #{tpu_custom_call.1} parent=1 // pred_fallthru
      _
    // Predicated region
    $region10: #{tpu_custom_call.1} parent=1 // pred_check
      _
    $region11: #{tpu_custom_call.1} parent=1 // pred_check_branch
      %34 = sbr.rel (0) target = $region13
    $region12: #{tpu_custom_call.1} parent=1 // pred_region
      %35 = dma.done [#allocation3], 64
    $region13: #{tpu_custom_call.1} parent=1 // pred_fallthru
      _
    // Predicated region
    $region14: #{tpu_custom_call.1} parent=1 // pred_check
      _
    $region15: #{tpu_custom_call.1} parent=1 // pred_check_branch
      %37 = sbr.rel (0) target = $region17
    $region16: #{tpu_custom_call.1} parent=1 // pred_region
      %38 = dma.done [#allocation5], 32
    $region17: #{tpu_custom_call.1} parent=1 // pred_fallthru
      _
    %v39 = vld [vmem:[#allocation2] sm:$0x3]
    %v40 = vld [vmem:[#allocation2 + $0x2] sm:$0x3]
    %v41 = vld [vmem:[#allocation4] sm:$0x1]
    %v42 = vld [vmem:[#allocation4 + $0x1] sm:$0x1]
    %v43 = vunpack.c.0.s8 %v41
    %v44 = vunpack.c.0.s8 %v42
    %v45 = vcvt.s32.f32 %v43
    %v46 = vcvt.s32.f32 %v44
    %v47 = vmul.f32 %v39, %v45
    %v48 = vmul.f32 %v40, %v46
    %vm49 = vcmask 1041408
    %v50 = vsel %vm49, %v47, 0.0
    %v51 = vrot.slane %v50, 4
    %v52 = vadd.f32 %v50, %v51
    %v53 = vrot.slane %v52, 2
    %v54 = vadd.f32 %v52, %v53
    %v55 = vrot.slane %v54, 1
    %v56 = vadd.f32 %v54, %v55
    %v57 = vsel %vm49, %v48, 0.0
    %v58 = vrot.slane %v57, 4
    %v59 = vadd.f32 %v57, %v58
    %v60 = vrot.slane %v59, 2
    %v61 = vadd.f32 %v59, %v60
    %v62 = vrot.slane %v61, 1
    %v63 = vadd.f32 %v61, %v62
    %v64 = vadd.f32 %v39, %v45
    %v65 = vadd.f32 %v40, %v46
    %v66 = vsel %vm49, %v64, 0.0
    %v67 = vrot.slane %v66, 4
    %v68 = vadd.f32 %v66, %v67
    %v69 = vrot.slane %v68, 2
    %v70 = vadd.f32 %v68, %v69
    %v71 = vrot.slane %v70, 1
    %v72 = vadd.f32 %v70, %v71
    %v73 = vsel %vm49, %v65, 0.0
    %v74 = vrot.slane %v73, 4
    %v75 = vadd.f32 %v73, %v74
    %v76 = vrot.slane %v75, 2
    %v77 = vadd.f32 %v75, %v76
    %v78 = vrot.slane %v77, 1
    %v79 = vadd.f32 %v77, %v78
    %vm82 = vcmask 1041409
    %v83 = vsel %vm82, %v63, %v56
    %v85 = vsel %vm49, %v83, 0.0
    %86 = vadd.xlane.f32.xlu0 %v85
    %v87 = vpop.xlane.xlu0 %86
    %v90 = vsel %vm82, %v79, %v72
    %v92 = vsel %vm49, %v90, 0.0
    %93 = vadd.xlane.f32.xlu0 %v92
    %v94 = vpop.xlane.xlu0 %93
    %v95 = vmul.f32 %v87, 2.0
    %v96 = vadd.f32 %v95, 1.0
    %v97 = vadd.f32 %v94, 1.0
    %v98 = vrcp.pop %v97
    %v99 = vmul.f32 %v96, %v98
    %v100 = vsub.f32 1.0, %v99
    %v102 = vlaneseq
    %v103 = vshrl.u32 %v102, 7
    %v104 = vsub.s32 0, %v103
    %v105 = vrot.slane %v100, %v104
    %v106 = vlaneseq
    %v107 = vshrl.u32 %v106, 7
    %v108 = vsub.s32 1, %v107
    %v109 = vrot.slane %v100, %v108
    %vm112 = vcmask 0
    %113 = vst.msk [vmem:[%s2] sm:$0x1] %vm112, %v105
    %114 = vst.msk [vmem:[%s2 + $0x1] sm:$0x1] %vm112, %v109
    // Predicated region
    $region18: #{tpu_custom_call.1} parent=1 // pred_check
      _
    $region19: #{tpu_custom_call.1} parent=1 // pred_check_branch
      %116 = sbr.rel (0) target = $region21
    $region20: #{tpu_custom_call.1} parent=1 // pred_region
      _
    $region21: #{tpu_custom_call.1} parent=1 // pred_fallthru
      _
    // Predicated region
    $region22: #{tpu_custom_call.1} parent=1 // pred_check
      _
    $region23: #{tpu_custom_call.1} parent=1 // pred_check_branch
      %118 = sbr.rel (0) target = $region25
    $region24: #{tpu_custom_call.1} parent=1 // pred_region
      _
    $region25: #{tpu_custom_call.1} parent=1 // pred_fallthru
      _
    %119 = vsyncpa [#allocation3], 1
    %120 = vsyncpa [#allocation5], 1

</llo_original>
